<compile_context>
chip_gen: v5e
topology: v5e:2x2
jax: 0.10.0
libtpu: 0.0.40
codegen_flags: <defaults>
</compile_context>

<pallas_src>
import functools

import jax
import jax.numpy as jnp
from jax import lax
from jax.experimental import pallas as pl
from jax.experimental.pallas import tpu as pltpu

ALPHA = 1.0
GAMMA = 2.0


def _focal_loss_kernel(x_ref, t_ref, psum_ref, *, alpha, gamma, total_n, tile_n):
    i = pl.program_id(0)

    x = x_ref[...].astype(jnp.float32)          # (TN, C)
    tgt = t_ref[...]                            # (TN, 1) int32

    # Numerically stable logsumexp along the class (lane) axis.
    m = jnp.max(x, axis=-1, keepdims=True)                              # (TN, 1)
    lse = jnp.log(jnp.sum(jnp.exp(x - m), axis=-1, keepdims=True)) + m  # (TN, 1)

    # Gather the target logit via a one-hot mask + lane reduction (XLU).
    col = lax.broadcasted_iota(jnp.int32, x.shape, 1)                   # (TN, C)
    x_t = jnp.sum(jnp.where(col == tgt, x, 0.0), axis=-1, keepdims=True)

    ce = lse - x_t                              # (TN, 1) per-sample cross entropy
    pt = jnp.exp(-ce)
    one_m_pt = jnp.maximum(1.0 - pt, 0.0)       # clamp: pow(neg, float) would NaN

    if gamma == 2.0:
        mod = one_m_pt * one_m_pt               # VPU multiply, not EUP log/exp pow
    elif gamma == 1.0:
        mod = one_m_pt
    elif gamma == 0.0:
        mod = jnp.ones_like(one_m_pt)
    else:
        mod = one_m_pt ** gamma

    fl = alpha * mod * ce                       # (TN, 1)

    # Mask out padded rows so they contribute nothing to the partial sum.
    row = lax.broadcasted_iota(jnp.int32, fl.shape, 0) + i * tile_n
    fl = jnp.where(row < total_n, fl, 0.0)

    psum_ref[...] = jnp.sum(fl).reshape(1, 1, 1)


def _choose_tile_n(n, c, itemsize, base, target_bytes=4 << 20, max_rows=8192):
    rows = max(base, target_bytes // max(1, c * itemsize))
    rows = int(min(rows, max_rows))
    n_rounded = ((n + base - 1) // base) * base
    rows = min(rows, n_rounded)                 # never tile bigger than (padded) N
    rows = max(base, (rows // base) * base)
    return rows


def focal_loss(inputs, targets, *, alpha=ALPHA, gamma=GAMMA, tile_n=None):
    """inputs: (N, C) float logits (f32 or bf16), targets: (N,) int class ids -> scalar mean focal loss."""
    N, C = inputs.shape
    itemsize = jnp.dtype(inputs.dtype).itemsize
    base = 16 if jnp.dtype(inputs.dtype) == jnp.dtype(jnp.bfloat16) else 8

    if tile_n is None:
        tile_n = _choose_tile_n(N, C, itemsize, base)
    else:
        tile_n = max(base, (int(tile_n) // base) * base)

    # Pad the batch to a multiple of tile_n; padded rows are masked in-kernel.
    n_pad = (-N) % tile_n
    if n_pad:
        inputs = jnp.pad(inputs, ((0, n_pad), (0, 0)))
        targets = jnp.pad(targets, (0, n_pad))
    Np = N + n_pad
    num_tiles = Np // tile_n
    targets2d = targets.astype(jnp.int32).reshape(Np, 1)

    # VMEM budget: 2 pipeline buffers x (logits block + targets block) plus slack;
    # clamp to stay within v5e defaults-override needs and the v7x 64 MiB physical budget.
    block_bytes = tile_n * C * itemsize + tile_n * 4
    vmem_limit = int(min(max(32 << 20, 4 * block_bytes + (8 << 20)), 48 << 20))

    kernel = functools.partial(
        _focal_loss_kernel,
        alpha=float(alpha), gamma=float(gamma), total_n=N, tile_n=tile_n)

    psums = pl.pallas_call(
        kernel,
        out_shape=jax.ShapeDtypeStruct((num_tiles, 1, 1), jnp.float32),
        grid_spec=pltpu.PrefetchScalarGridSpec(
            num_scalar_prefetch=0,
            grid=(num_tiles,),
            in_specs=[
                pl.BlockSpec((tile_n, C), lambda i: (i, 0)),
                pl.BlockSpec((tile_n, 1), lambda i: (i, 0)),
            ],
            out_specs=pl.BlockSpec((1, 1, 1), lambda i: (i, 0, 0)),
        ),
        compiler_params=pltpu.CompilerParams(
            dimension_semantics=("parallel",),
            vmem_limit_bytes=vmem_limit),
    )(inputs, targets2d)

    return jnp.sum(psums) / jnp.float32(N)


def focal_loss_ref(inputs, targets, *, alpha=ALPHA, gamma=GAMMA):
    """Pure-JAX reference mirroring the PyTorch module (logits=True, mean reduction)."""
    logp = jax.nn.log_softmax(inputs.astype(jnp.float32), axis=-1)
    ce = -jnp.take_along_axis(logp, targets[:, None].astype(jnp.int32), axis=-1)[:, 0]
    pt = jnp.exp(-ce)
    fl = alpha * (1.0 - pt) ** gamma * ce
    return jnp.mean(fl)


if __name__ == "__main__":
    key = jax.random.PRNGKey(0)
    k_x, k_t, k_x2, k_t2 = jax.random.split(key, 4)

    # Small demo shapes: 16 samples, 32 classes.
    N, C = 16, 32
    inputs = jax.random.normal(k_x, (N, C), dtype=jnp.float32)
    targets = jax.random.randint(k_t, (N,), 0, C, dtype=jnp.int32)

    out = jax.block_until_ready(focal_loss(inputs, targets))
    ref = focal_loss_ref(inputs, targets)
    assert jnp.allclose(out, ref, rtol=1e-5, atol=1e-5), (out, ref)

    # Ragged batch + multi-tile path (exercises padding/masking and per-tile partials).
    N2 = 40
    inputs2 = jax.random.normal(k_x2, (N2, C), dtype=jnp.float32)
    targets2 = jax.random.randint(k_t2, (N2,), 0, C, dtype=jnp.int32)
    out2 = jax.block_until_ready(focal_loss(inputs2, targets2, tile_n=16))
    ref2 = focal_loss_ref(inputs2, targets2)
    assert jnp.allclose(out2, ref2, rtol=1e-5, atol=1e-5), (out2, ref2)

    print("KERNEL_OK")
</pallas_src>

<mosaic_0001>
module attributes {stable_mosaic.version = 11 : i64} {
  func.func @_focal_loss_kernel(%arg0: i32, %arg1: memref<16x32xf32, #tpu.memory_space<vmem>>, %arg2: memref<16x1xi32, #tpu.memory_space<vmem>>, %arg3: memref<1x1x1xf32, #tpu.memory_space<vmem>>) attributes {dimension_semantics = [#tpu.dimension_semantics<parallel>], iteration_bounds = array<i64: 1>, scalar_prefetch = 0 : i64, scratch_operands = 0 : i64, tpu.core_type = #tpu.core_type<tc>, window_params = [{transform_indices = @transform_0, window_bounds = array<i64: 16, 32>}, {transform_indices = @transform_1, window_bounds = array<i64: 16, 1>}, {transform_indices = @transform_2, window_bounds = array<i64: 1, 1, 1>}]} {
    %c0 = arith.constant 0 : index
    %c0_0 = arith.constant 0 : index
    %0 = vector.load %arg1[%c0, %c0_0] : memref<16x32xf32, #tpu.memory_space<vmem>>, vector<16x32xf32>
    %c0_1 = arith.constant 0 : index
    %c0_2 = arith.constant 0 : index
    %1 = vector.load %arg2[%c0_1, %c0_2] : memref<16x1xi32, #tpu.memory_space<vmem>>, vector<16x1xi32>
    %cst = arith.constant dense<0xFF800000> : vector<16xf32>
    %2 = vector.multi_reduction <maximumf>, %0, %cst [1] : vector<16x32xf32> to vector<16xf32>
    %3 = vector.shape_cast %2 : vector<16xf32> to vector<16x1xf32>
    %4 = vector.broadcast %3 : vector<16x1xf32> to vector<16x32xf32>
    %5 = arith.subf %0, %4 : vector<16x32xf32>
    %6 = math.exp %5 : vector<16x32xf32>
    %cst_3 = arith.constant dense<0.000000e+00> : vector<16xf32>
    %7 = vector.multi_reduction <add>, %6, %cst_3 [1] : vector<16x32xf32> to vector<16xf32>
    %8 = vector.shape_cast %7 : vector<16xf32> to vector<16x1xf32>
    %9 = math.log %8 : vector<16x1xf32>
    %10 = arith.addf %9, %3 : vector<16x1xf32>
    %11 = tpu.iota {dimensions = array<i32: 1>} : vector<16x32xi32>
    %12 = vector.broadcast %1 : vector<16x1xi32> to vector<16x32xi32>
    %13 = arith.cmpi eq, %11, %12 : vector<16x32xi32>
    %cst_4 = arith.constant 0.000000e+00 : f32
    %14 = vector.broadcast %cst_4 : f32 to vector<16x32xf32>
    %15 = arith.select %13, %0, %14 : vector<16x32xi1>, vector<16x32xf32>
    %cst_5 = arith.constant dense<0.000000e+00> : vector<16xf32>
    %16 = vector.multi_reduction <add>, %15, %cst_5 [1] : vector<16x32xf32> to vector<16xf32>
    %17 = vector.shape_cast %16 : vector<16xf32> to vector<16x1xf32>
    %18 = arith.subf %10, %17 : vector<16x1xf32>
    %cst_6 = arith.constant 0.000000e+00 : f32
    %19 = vector.broadcast %cst_6 : f32 to vector<16x1xf32>
    %20 = arith.subf %19, %18 : vector<16x1xf32>
    %21 = math.exp %20 : vector<16x1xf32>
    %cst_7 = arith.constant 1.000000e+00 : f32
    %22 = vector.broadcast %cst_7 : f32 to vector<16x1xf32>
    %23 = arith.subf %22, %21 : vector<16x1xf32>
    %cst_8 = arith.constant 0.000000e+00 : f32
    %24 = vector.broadcast %cst_8 : f32 to vector<16x1xf32>
    %25 = arith.maximumf %23, %24 : vector<16x1xf32>
    %26 = arith.mulf %25, %25 : vector<16x1xf32>
    %cst_9 = arith.constant 1.000000e+00 : f32
    %27 = vector.broadcast %cst_9 : f32 to vector<16x1xf32>
    %28 = arith.mulf %27, %26 : vector<16x1xf32>
    %29 = arith.mulf %28, %18 : vector<16x1xf32>
    %30 = tpu.iota {dimensions = array<i32: 0>} : vector<16x1xi32>
    %c16_i32 = arith.constant 16 : i32
    %31 = arith.muli %arg0, %c16_i32 : i32
    %32 = vector.broadcast %31 : i32 to vector<16x1xi32>
    %33 = arith.addi %30, %32 : vector<16x1xi32>
    %c16_i32_10 = arith.constant 16 : i32
    %34 = vector.broadcast %c16_i32_10 : i32 to vector<16x1xi32>
    %35 = arith.cmpi slt, %33, %34 : vector<16x1xi32>
    %cst_11 = arith.constant 0.000000e+00 : f32
    %36 = vector.broadcast %cst_11 : f32 to vector<16x1xf32>
    %37 = arith.select %35, %29, %36 : vector<16x1xi1>, vector<16x1xf32>
    %38 = vector.shape_cast %37 : vector<16x1xf32> to vector<1x16x1xf32>
    %cst_12 = arith.constant dense<0.000000e+00> : vector<1xf32>
    %39 = vector.multi_reduction <add>, %38, %cst_12 [1, 2] : vector<1x16x1xf32> to vector<1xf32>
    %40 = vector.shape_cast %39 : vector<1xf32> to vector<1x1x1xf32>
    %41 = vector.extract %40[0, 0, 0] : f32 from vector<1x1x1xf32>
    %42 = vector.broadcast %41 : f32 to vector<1x1x1xf32>
    %c0_13 = arith.constant 0 : index
    %c0_14 = arith.constant 0 : index
    %c0_15 = arith.constant 0 : index
    %43 = vector.load %arg3[%c0_13, %c0_14, %c0_15] : memref<1x1x1xf32, #tpu.memory_space<vmem>>, vector<1x1x1xf32>
    tpu.vector_store %arg3[%c0_13, %c0_14, %c0_15], %42 {strides = array<i32>} : memref<1x1x1xf32, #tpu.memory_space<vmem>>, vector<1x1x1xf32>,
    return
  }
  func.func @transform_0(%arg0: i32) -> (i32, i32) {
    %c0_i32 = arith.constant 0 : i32
    %c0_i32_0 = arith.constant 0 : i32
    return %arg0, %c0_i32 : i32, i32
  }
  func.func @transform_1(%arg0: i32) -> (i32, i32) {
    %c0_i32 = arith.constant 0 : i32
    %c0_i32_0 = arith.constant 0 : i32
    return %arg0, %c0_i32 : i32, i32
  }
  func.func @transform_2(%arg0: i32) -> (i32, i32, i32) {
    %c0_i32 = arith.constant 0 : i32
    %c0_i32_0 = arith.constant 0 : i32
    %c0_i32_1 = arith.constant 0 : i32
    return %arg0, %c0_i32, %c0_i32_0 : i32, i32, i32
  }
}

</mosaic_0001>

<llo_original>
// kernel: tpu_custom_call.1
$region0: #{tpu_custom_call.1}
  #allocation0 [shape = 'u32[]', space=smem, size = 0x4, offset = 0x4, fixed_abs, tag = 'smem constant byte address 0x4 - core index']
  #allocation1 [shape = 'u32[72,128]{1,0:T(1,128)}', space=vmem, size = 0x9000, scoped, tag = 'internal scratch']
  %s0 = inlined_call_operand.vmem [shape: f32[16,32], index: 0, kind: input, shape index: {}]
  %s1 = inlined_call_operand.vmem [shape: s32[16,1], index: 1, kind: input, shape index: {}]
  %s2 = inlined_call_operand.hbm [shape: f32[1,1,1], index: 2, kind: output, shape index: {}]
  %s3 = sld [smem:[#allocation0]]
  $region18: #{tpu_custom_call.1} parent=0
    _
  %s5 = ssub.s32 1, %s3
  %s6 = scalar_select 0, %s5, %s3
  $region1: #{tpu_custom_call.1} parent=0
    #allocation2 [shape = 'u8[512]{0}', space=vmem, size = 0x400, scoped, tag = 'output window, operand 0, single buffered']
    #allocation3 [shape = 's32[1]{0}', space=sflag, size = 0x4, scoped, tag = 'scoped memory for tpu_custom_call.1']
    %7 = vsyncpa [#allocation3], 0
    // Predicated region
    $region2: #{tpu_custom_call.1} parent=1 // pred_check
      _
    $region3: #{tpu_custom_call.1} parent=1 // pred_check_branch
      %9 = sbr.rel (0) target = $region5
    $region4: #{tpu_custom_call.1} parent=1 // pred_region
      _
    $region5: #{tpu_custom_call.1} parent=1 // pred_fallthru
      _
    // Predicated region
    $region6: #{tpu_custom_call.1} parent=1 // pred_check
      _
    $region7: #{tpu_custom_call.1} parent=1 // pred_check_branch
      %11 = sbr.rel (0) target = $region9
    $region8: #{tpu_custom_call.1} parent=1 // pred_region
      _
    $region9: #{tpu_custom_call.1} parent=1 // pred_fallthru
      _
    %v12 = vld [vmem:[%s0] sm:$0xff]
    %v13 = vld [vmem:[%s0 + $0x8] sm:$0xff]
    %v14 = vld [vmem:[%s1] sm:$0xff]
    %v15 = vld [vmem:[%s1 + $0x8] sm:$0xff]
    %vm16 = vcmask 261120
    %v17 = vsel %vm16, %v12, -inf
    %18 = vmax.xlane.f32.xlu0 %v17
    %v19 = vpop.xlane.xlu0 %18
    %v20 = vsel %vm16, %v13, -inf
    %21 = vmax.xlane.f32.xlu0 %v20
    %v22 = vpop.xlane.xlu0 %21
    %v23 = vsub.f32 %v12, %v19
    %v24 = vsub.f32 %v13, %v22
    %v25 = vmul.f32 %v23, 1.442695
    %v26 = vpow.pop %v25
    %v27 = vmul.f32 %v24, 1.442695
    %v28 = vpow.pop %v27
    %v29 = vsel %vm16, %v26, 0.0
    %30 = vadd.xlane.f32.xlu0 %v29
    %v31 = vpop.xlane.xlu0 %30
    %v32 = vsel %vm16, %v28, 0.0
    %33 = vadd.xlane.f32.xlu0 %v32
    %v34 = vpop.xlane.xlu0 %33
    %v35 = vlog2.pop %v31
    %v36 = vmul.f32 %v35, 0.6931472
    %v37 = vlog2.pop %v34
    %v38 = vmul.f32 %v37, 0.6931472
    %v39 = vadd.f32 %v36, %v19
    %v40 = vadd.f32 %v38, %v22
    %v41 = vlaneseq
    %v42 = vand.u32 %v41, 127
    %43 = vset.pattern.permute.xlu0 0
    %44 = vperm.xlu0 %43, %v14
    %v45 = vpop.permute.xlu0 %44
    %46 = vset.pattern.permute.xlu0 0
    %47 = vperm.xlu0 %46, %v15
    %v48 = vpop.permute.xlu0 %47
    %vm49 = vcmp.eq.s32.totalorder %v42, %v45
    %vm50 = vcmp.eq.s32.totalorder %v42, %v48
    %v51 = vsel %vm49, %v12, 0.0
    %v52 = vsel %vm50, %v13, 0.0
    %v53 = vsel %vm16, %v51, 0.0
    %54 = vadd.xlane.f32.xlu0 %v53
    %v55 = vpop.xlane.xlu0 %54
    %v56 = vsel %vm16, %v52, 0.0
    %57 = vadd.xlane.f32.xlu0 %v56
    %v58 = vpop.xlane.xlu0 %57
    %v59 = vsub.f32 %v39, %v55
    %v60 = vsub.f32 %v40, %v58
    %v61 = vsub.f32 0.0, %v59
    %v62 = vsub.f32 0.0, %v60
    %v63 = vmul.f32 %v61, 1.442695
    %v64 = vpow.pop %v63
    %v65 = vmul.f32 %v62, 1.442695
    %v66 = vpow.pop %v65
    %v67 = vsub.f32 1.0, %v64
    %v68 = vsub.f32 1.0, %v66
    %v69 = vmax.f32 %v67, 0.0
    %v70 = vmax.f32 %v68, 0.0
    %v71 = vmul.f32 %v69, %v69
    %v72 = vmul.f32 %v70, %v70
    %v73 = vmul.f32 %v71, %v59
    %v74 = vmul.f32 %v72, %v60
    %v75 = vlaneseq
    %v76 = vshrl.u32 %v75, 7
    %v77 = vadd.s32 %v76, 8
    %s78 = smul.u32 0, 16
    %v79 = vstv %s78
    %v80 = vadd.s32 %v76, %v79
    %v81 = vadd.s32 %v77, %v79
    %vm82 = vcmp.lt.s32.totalorder %v80, 16
    %vm83 = vcmp.lt.s32.totalorder %v81, 16
    %v84 = vsel %vm82, %v73, 0.0
    %v85 = vsel %vm83, %v74, 0.0
    %vm86 = vcmask 7168
    %v87 = vsel %vm86, %v84, 0.0
    %v88 = vsel %vm86, %v85, 0.0
    %v89 = vadd.f32 %v87, %v88
    %90 = vadd.xlane.f32.xlu0 %v89
    %v91 = vpop.xlane.xlu0 %90
    %v92 = vrot.slane %v91, 4
    %v93 = vadd.f32 %v91, %v92
    %v94 = vrot.slane %v93, 2
    %v95 = vadd.f32 %v93, %v94
    %v96 = vrot.slane %v95, 1
    %v97 = vadd.f32 %v95, %v96
    %s98 = vtos %v97
    %v99 = vstv %s98
    %vm100 = vcmask 0
    %101 = vst.msk [vmem:[#allocation2] sm:$0x1] %vm100, %v99
    // Predicated region
    $region10: #{tpu_custom_call.1} parent=1 // pred_check
      _
    $region11: #{tpu_custom_call.1} parent=1 // pred_check_branch
      %103 = sbr.rel (0) target = $region13
    $region12: #{tpu_custom_call.1} parent=1 // pred_region
      %105 = vsyncadd [#allocation3], 0
      %s107 = sshll.u32 [#allocation2], 4
      %s108 = int_to_ptr.vmem [resolvable:$true] %s107
      %s109 = sshll.u32 %s2, 4
      %s110 = int_to_ptr.hbm [resolvable:$true] %s109
      %112 = dma.vmem_to_hbm [thread:$0]  %s108, 16, %s110, [#allocation3]
    $region13: #{tpu_custom_call.1} parent=1 // pred_fallthru
      _
    // Predicated region
    $region14: #{tpu_custom_call.1} parent=1 // pred_check
      _
    $region15: #{tpu_custom_call.1} parent=1 // pred_check_branch
      %114 = sbr.rel (0) target = $region17
    $region16: #{tpu_custom_call.1} parent=1 // pred_region
      %116 = dma.done [#allocation3], 16
    $region17: #{tpu_custom_call.1} parent=1 // pred_fallthru
      _
    %117 = vsyncpa [#allocation3], 1

</llo_original>
